<compile_context>
chip_gen: v7x
topology: tpu7x:2x2x1
jax: 0.10.0
libtpu: 0.0.40
codegen_flags: <defaults>
</compile_context>

<pallas_src>
import jax
import jax.numpy as jnp
from jax.experimental import pallas as pl
from jax.experimental.pallas import tpu as pltpu


# ---------------------------------------------------------------------------
# Kernel
# ---------------------------------------------------------------------------
def critic_kernel(s_ref, a_ref,
                  w1s_ref, w1a_ref, b1_ref,
                  w2_ref, b2_ref,
                  w3_ref, b3_ref,
                  q_ref):
    """Fused two-head critic MLP on one batch tile."""
    # Layer 1: [state | action] @ W1  ==  state @ W1_state + action @ W1_action
    h = (jnp.dot(s_ref[...], w1s_ref[...], preferred_element_type=jnp.float32)
         + jnp.dot(a_ref[...], w1a_ref[...], preferred_element_type=jnp.float32)
         + b1_ref[...])
    h = jnp.maximum(h, 0.0)

    # Layer 2: block-diagonal (2H, 2H) keeps the two heads independent.
    h = jnp.dot(h, w2_ref[...], preferred_element_type=jnp.float32) + b2_ref[...]
    h = jnp.maximum(h, 0.0)

    # Layer 3: block-diagonal (2H, 2) -> single lane-contiguous (TM, 2) output.
    q_ref[...] = (jnp.dot(h, w3_ref[...], preferred_element_type=jnp.float32)
                  + b3_ref[...])


# ---------------------------------------------------------------------------
# Param packing (offline, outside the kernel)
# ---------------------------------------------------------------------------
def pack_params(params, state_dim):
    """Pack the two heads' (w1,b1,w2,b2,w3,b3) into fused slabs."""
    (w1a, b1a, w2a, b2a, w3a, b3a) = params["q1"]
    (w1b, b1b, w2b, b2b, w3b, b3b) = params["q2"]
    hidden = w1a.shape[1]

    # Layer 1: column-concat (D_in, 2H), then static row-split state / action.
    w1 = jnp.concatenate([w1a, w1b], axis=1)            # (D_in, 2H)
    w1_s = w1[:state_dim, :]                            # (S, 2H)
    w1_a = w1[state_dim:, :]                            # (A, 2H)
    b1 = jnp.concatenate([b1a, b1b], axis=1)            # (1, 2H)

    # Layer 2: block-diagonal (2H, 2H).
    z = jnp.zeros((hidden, hidden), w2a.dtype)
    w2 = jnp.block([[w2a, z], [z, w2b]])                # (2H, 2H)
    b2 = jnp.concatenate([b2a, b2b], axis=1)            # (1, 2H)

    # Layer 3: block-diagonal (2H, 2).
    z1 = jnp.zeros((hidden, 1), w3a.dtype)
    w3 = jnp.block([[w3a, z1], [z1, w3b]])              # (2H, 2)
    b3 = jnp.concatenate([b3a, b3b], axis=1)            # (1, 2)

    return w1_s, w1_a, b1, w2, b2, w3, b3


# ---------------------------------------------------------------------------
# Wrapper
# ---------------------------------------------------------------------------
def critic_forward(state, action, params, *, tile_m=512):
    """Returns (q1, q2), each (B, 1) float32."""
    B, S = state.shape
    _, A = action.shape

    w1_s, w1_a, b1, w2, b2, w3, b3 = pack_params(params, S)
    H2 = w2.shape[0]  # 2 * hidden

    # Batch tile: whole batch if small, else a multiple-of-8 tile streamed
    # over a parallel grid (double-buffered by the BlockSpec pipeline).
    tm = B if B <= tile_m else tile_m
    grid = (pl.cdiv(B, tm),)

    def resident(shape):  # weights/biases stay resident across batch tiles
        return pl.BlockSpec(shape, lambda i: (0, 0))

    q = pl.pallas_call(
        critic_kernel,
        out_shape=jax.ShapeDtypeStruct((B, 2), jnp.float32),
        grid=grid,
        in_specs=[
            pl.BlockSpec((tm, S), lambda i: (i, 0)),     # state tile
            pl.BlockSpec((tm, A), lambda i: (i, 0)),     # action tile
            resident((S, H2)),                           # W1 (state rows)
            resident((A, H2)),                           # W1 (action rows)
            resident((1, H2)),                           # b1
            resident((H2, H2)),                          # W2 (block-diag)
            resident((1, H2)),                           # b2
            resident((H2, 2)),                           # W3 (block-diag)
            resident((1, 2)),                            # b3
        ],
        out_specs=pl.BlockSpec((tm, 2), lambda i: (i, 0)),
        compiler_params=pltpu.CompilerParams(
            dimension_semantics=("parallel",),           # v7x megacore split
        ),
    )(state, action, w1_s, w1_a, b1, w2, b2, w3, b3)

    return q[:, 0:1], q[:, 1:2]


# ---------------------------------------------------------------------------
# Params / reference
# ---------------------------------------------------------------------------
def init_params(key, d_in, hidden):
    def head_params(k):
        k1, k2, k3 = jax.random.split(k, 3)
        w1 = jax.random.normal(k1, (d_in, hidden), jnp.float32) * 0.1
        b1 = jnp.zeros((1, hidden), jnp.float32)
        w2 = jax.random.normal(k2, (hidden, hidden), jnp.float32) * 0.1
        b2 = jnp.zeros((1, hidden), jnp.float32)
        w3 = jax.random.normal(k3, (hidden, 1), jnp.float32) * 0.1
        b3 = jnp.zeros((1, 1), jnp.float32)
        return (w1, b1, w2, b2, w3, b3)

    ka, kb = jax.random.split(key)
    return {"q1": head_params(ka), "q2": head_params(kb)}


def critic_reference(state, action, params):
    """Pure-JAX reference mirroring the PyTorch forward (unfused heads)."""
    x = jnp.concatenate([state, action], axis=1)

    def head(p):
        w1, b1, w2, b2, w3, b3 = p
        h = jnp.maximum(x @ w1 + b1, 0.0)
        h = jnp.maximum(h @ w2 + b2, 0.0)
        return h @ w3 + b3

    return head(params["q1"]), head(params["q2"])


# ---------------------------------------------------------------------------
if __name__ == "__main__":
    key = jax.random.PRNGKey(0)
    k_s, k_a, k_p = jax.random.split(key, 3)

    B, STATE_DIM, ACTION_DIM, HIDDEN = 2, 12, 4, 32

    state = jax.random.normal(k_s, (B, STATE_DIM), jnp.float32)
    action = jax.random.normal(k_a, (B, ACTION_DIM), jnp.float32)
    params = init_params(k_p, STATE_DIM + ACTION_DIM, HIDDEN)

    fwd = jax.jit(critic_forward)
    q1, q2 = fwd(state, action, params)
    jax.block_until_ready((q1, q2))

    q1_ref, q2_ref = critic_reference(state, action, params)
    assert q1.shape == (B, 1) and q2.shape == (B, 1)
    assert jnp.allclose(q1, q1_ref, atol=1e-5), "q1 mismatch vs reference"
    assert jnp.allclose(q2, q2_ref, atol=1e-5), "q2 mismatch vs reference"

    print("KERNEL_OK")
</pallas_src>

<mosaic_0001>
module attributes {stable_mosaic.version = 11 : i64} {
  func.func @critic_kernel(%arg0: i32, %arg1: memref<2x12xf32, #tpu.memory_space<vmem>>, %arg2: memref<2x4xf32, #tpu.memory_space<vmem>>, %arg3: memref<12x64xf32, #tpu.memory_space<vmem>>, %arg4: memref<4x64xf32, #tpu.memory_space<vmem>>, %arg5: memref<1x64xf32, #tpu.memory_space<vmem>>, %arg6: memref<64x64xf32, #tpu.memory_space<vmem>>, %arg7: memref<1x64xf32, #tpu.memory_space<vmem>>, %arg8: memref<64x2xf32, #tpu.memory_space<vmem>>, %arg9: memref<1x2xf32, #tpu.memory_space<vmem>>, %arg10: memref<2x2xf32, #tpu.memory_space<vmem>>) attributes {dimension_semantics = [#tpu.dimension_semantics<parallel>], iteration_bounds = array<i64: 1>, scalar_prefetch = 0 : i64, scratch_operands = 0 : i64, tpu.core_type = #tpu.core_type<tc>, window_params = [{transform_indices = @transform_0, window_bounds = array<i64: 2, 12>}, {transform_indices = @transform_1, window_bounds = array<i64: 2, 4>}, {pipeline_mode = #tpu.pipeline_mode<synchronous>, transform_indices = @transform_2, window_bounds = array<i64: 12, 64>}, {pipeline_mode = #tpu.pipeline_mode<synchronous>, transform_indices = @transform_3, window_bounds = array<i64: 4, 64>}, {pipeline_mode = #tpu.pipeline_mode<synchronous>, transform_indices = @transform_4, window_bounds = array<i64: 1, 64>}, {pipeline_mode = #tpu.pipeline_mode<synchronous>, transform_indices = @transform_5, window_bounds = array<i64: 64, 64>}, {pipeline_mode = #tpu.pipeline_mode<synchronous>, transform_indices = @transform_6, window_bounds = array<i64: 1, 64>}, {pipeline_mode = #tpu.pipeline_mode<synchronous>, transform_indices = @transform_7, window_bounds = array<i64: 64, 2>}, {pipeline_mode = #tpu.pipeline_mode<synchronous>, transform_indices = @transform_8, window_bounds = array<i64: 1, 2>}, {transform_indices = @transform_9, window_bounds = array<i64: 2, 2>}]} {
    %c0 = arith.constant 0 : index
    %c0_0 = arith.constant 0 : index
    %0 = vector.load %arg1[%c0, %c0_0] : memref<2x12xf32, #tpu.memory_space<vmem>>, vector<2x12xf32>
    %c0_1 = arith.constant 0 : index
    %c0_2 = arith.constant 0 : index
    %1 = vector.load %arg3[%c0_1, %c0_2] : memref<12x64xf32, #tpu.memory_space<vmem>>, vector<12x64xf32>
    %cst = arith.constant dense<0.000000e+00> : vector<2x64xf32>
    %2 = tpu.matmul %0, %1, %cst {dimension_numbers = #tpu.dot_dimension_numbers<[1], [0], [0], [1], [0, 0, 1, 1], [], []>} : vector<2x12xf32>, vector<12x64xf32>, vector<2x64xf32> -> vector<2x64xf32>
    %c0_3 = arith.constant 0 : index
    %c0_4 = arith.constant 0 : index
    %3 = vector.load %arg2[%c0_3, %c0_4] : memref<2x4xf32, #tpu.memory_space<vmem>>, vector<2x4xf32>
    %c0_5 = arith.constant 0 : index
    %c0_6 = arith.constant 0 : index
    %4 = vector.load %arg4[%c0_5, %c0_6] : memref<4x64xf32, #tpu.memory_space<vmem>>, vector<4x64xf32>
    %cst_7 = arith.constant dense<0.000000e+00> : vector<2x64xf32>
    %5 = tpu.matmul %3, %4, %cst_7 {dimension_numbers = #tpu.dot_dimension_numbers<[1], [0], [0], [1], [0, 0, 1, 1], [], []>} : vector<2x4xf32>, vector<4x64xf32>, vector<2x64xf32> -> vector<2x64xf32>
    %6 = arith.addf %2, %5 : vector<2x64xf32>
    %c0_8 = arith.constant 0 : index
    %c0_9 = arith.constant 0 : index
    %7 = vector.load %arg5[%c0_8, %c0_9] : memref<1x64xf32, #tpu.memory_space<vmem>>, vector<1x64xf32>
    %8 = vector.broadcast %7 : vector<1x64xf32> to vector<2x64xf32>
    %9 = arith.addf %6, %8 : vector<2x64xf32>
    %cst_10 = arith.constant 0.000000e+00 : f32
    %10 = vector.broadcast %cst_10 : f32 to vector<2x64xf32>
    %11 = arith.maximumf %9, %10 : vector<2x64xf32>
    %c0_11 = arith.constant 0 : index
    %c0_12 = arith.constant 0 : index
    %12 = vector.load %arg6[%c0_11, %c0_12] : memref<64x64xf32, #tpu.memory_space<vmem>>, vector<64x64xf32>
    %cst_13 = arith.constant dense<0.000000e+00> : vector<2x64xf32>
    %13 = tpu.matmul %11, %12, %cst_13 {dimension_numbers = #tpu.dot_dimension_numbers<[1], [0], [0], [1], [0, 0, 1, 1], [], []>} : vector<2x64xf32>, vector<64x64xf32>, vector<2x64xf32> -> vector<2x64xf32>
    %c0_14 = arith.constant 0 : index
    %c0_15 = arith.constant 0 : index
    %14 = vector.load %arg7[%c0_14, %c0_15] : memref<1x64xf32, #tpu.memory_space<vmem>>, vector<1x64xf32>
    %15 = vector.broadcast %14 : vector<1x64xf32> to vector<2x64xf32>
    %16 = arith.addf %13, %15 : vector<2x64xf32>
    %cst_16 = arith.constant 0.000000e+00 : f32
    %17 = vector.broadcast %cst_16 : f32 to vector<2x64xf32>
    %18 = arith.maximumf %16, %17 : vector<2x64xf32>
    %c0_17 = arith.constant 0 : index
    %c0_18 = arith.constant 0 : index
    %19 = vector.load %arg8[%c0_17, %c0_18] : memref<64x2xf32, #tpu.memory_space<vmem>>, vector<64x2xf32>
    %cst_19 = arith.constant dense<0.000000e+00> : vector<2x2xf32>
    %20 = tpu.matmul %18, %19, %cst_19 {dimension_numbers = #tpu.dot_dimension_numbers<[1], [0], [0], [1], [0, 0, 1, 1], [], []>} : vector<2x64xf32>, vector<64x2xf32>, vector<2x2xf32> -> vector<2x2xf32>
    %c0_20 = arith.constant 0 : index
    %c0_21 = arith.constant 0 : index
    %21 = vector.load %arg9[%c0_20, %c0_21] : memref<1x2xf32, #tpu.memory_space<vmem>>, vector<1x2xf32>
    %22 = vector.broadcast %21 : vector<1x2xf32> to vector<2x2xf32>
    %23 = arith.addf %20, %22 : vector<2x2xf32>
    %c0_22 = arith.constant 0 : index
    %c0_23 = arith.constant 0 : index
    %24 = vector.load %arg10[%c0_22, %c0_23] : memref<2x2xf32, #tpu.memory_space<vmem>>, vector<2x2xf32>
    tpu.vector_store %arg10[%c0_22, %c0_23], %23 {strides = array<i32>} : memref<2x2xf32, #tpu.memory_space<vmem>>, vector<2x2xf32>,
    return
  }
  func.func @transform_0(%arg0: i32) -> (i32, i32) {
    %c0_i32 = arith.constant 0 : i32
    %c0_i32_0 = arith.constant 0 : i32
    return %arg0, %c0_i32 : i32, i32
  }
  func.func @transform_1(%arg0: i32) -> (i32, i32) {
    %c0_i32 = arith.constant 0 : i32
    %c0_i32_0 = arith.constant 0 : i32
    return %arg0, %c0_i32 : i32, i32
  }
  func.func @transform_2(%arg0: i32) -> (i32, i32) {
    %c0_i32 = arith.constant 0 : i32
    %c0_i32_0 = arith.constant 0 : i32
    %c0_i32_1 = arith.constant 0 : i32
    return %c0_i32, %c0_i32_0 : i32, i32
  }
  func.func @transform_3(%arg0: i32) -> (i32, i32) {
    %c0_i32 = arith.constant 0 : i32
    %c0_i32_0 = arith.constant 0 : i32
    %c0_i32_1 = arith.constant 0 : i32
    return %c0_i32, %c0_i32_0 : i32, i32
  }
  func.func @transform_4(%arg0: i32) -> (i32, i32) {
    %c0_i32 = arith.constant 0 : i32
    %c0_i32_0 = arith.constant 0 : i32
    %c0_i32_1 = arith.constant 0 : i32
    return %c0_i32, %c0_i32_0 : i32, i32
  }
  func.func @transform_5(%arg0: i32) -> (i32, i32) {
    %c0_i32 = arith.constant 0 : i32
    %c0_i32_0 = arith.constant 0 : i32
    %c0_i32_1 = arith.constant 0 : i32
    return %c0_i32, %c0_i32_0 : i32, i32
  }
  func.func @transform_6(%arg0: i32) -> (i32, i32) {
    %c0_i32 = arith.constant 0 : i32
    %c0_i32_0 = arith.constant 0 : i32
    %c0_i32_1 = arith.constant 0 : i32
    return %c0_i32, %c0_i32_0 : i32, i32
  }
  func.func @transform_7(%arg0: i32) -> (i32, i32) {
    %c0_i32 = arith.constant 0 : i32
    %c0_i32_0 = arith.constant 0 : i32
    %c0_i32_1 = arith.constant 0 : i32
    return %c0_i32, %c0_i32_0 : i32, i32
  }
  func.func @transform_8(%arg0: i32) -> (i32, i32) {
    %c0_i32 = arith.constant 0 : i32
    %c0_i32_0 = arith.constant 0 : i32
    %c0_i32_1 = arith.constant 0 : i32
    return %c0_i32, %c0_i32_0 : i32, i32
  }
  func.func @transform_9(%arg0: i32) -> (i32, i32) {
    %c0_i32 = arith.constant 0 : i32
    %c0_i32_0 = arith.constant 0 : i32
    return %arg0, %c0_i32 : i32, i32
  }
}

</mosaic_0001>

<llo_original>
// kernel: critic_forward.1
$region0: #{critic_forward.1}
  #allocation0 [shape = 'u32[]', space=smem, size = 0x4, offset = 0x4, fixed_abs, tag = 'smem constant byte address 0x4 - core index']
  #allocation1 [shape = 'u32[144,128]{1,0:T(1,128)}', space=vmem, size = 0x12000, scoped, tag = 'internal scratch']
  %s0 = inlined_call_operand.vmem [shape: f32[2,12], index: 0, kind: input, shape index: {}]
  %s1 = inlined_call_operand.vmem [shape: f32[2,4], index: 1, kind: input, shape index: {}]
  %s2 = inlined_call_operand.vmem [shape: f32[12,64], index: 2, kind: input, shape index: {}]
  %s3 = inlined_call_operand.vmem [shape: f32[4,64], index: 3, kind: input, shape index: {}]
  %s4 = inlined_call_operand.vmem [shape: f32[1,64], index: 4, kind: input, shape index: {}]
  %s5 = inlined_call_operand.vmem [shape: f32[64,64], index: 5, kind: input, shape index: {}]
  %s6 = inlined_call_operand.vmem [shape: f32[1,64], index: 6, kind: input, shape index: {}]
  %s7 = inlined_call_operand.vmem [shape: f32[64,2], index: 7, kind: input, shape index: {}]
  %s8 = inlined_call_operand.vmem [shape: f32[1,2], index: 8, kind: input, shape index: {}]
  %s9 = inlined_call_operand.vmem [shape: f32[2,2], index: 9, kind: output, shape index: {}]
  %s10 = sld [smem:[#allocation0]]
  $region46: #{critic_forward.1} parent=0
    _
  %s12 = ssub.s32 1, %s10
  %s13 = scalar_select 0, %s12, %s10
  // Predicated region
  $region2: #{critic_forward.1} parent=0 // pred_check
    _
  $region3: #{critic_forward.1} parent=0 // pred_check_branch
    %15 = sbr.rel (0) target = $region5
  $region4: #{critic_forward.1} parent=0 // pred_region
    _
  $region5: #{critic_forward.1} parent=0 // pred_fallthru
    _
  // Predicated region
  $region6: #{critic_forward.1} parent=0 // pred_check
    _
  $region7: #{critic_forward.1} parent=0 // pred_check_branch
    %17 = sbr.rel (0) target = $region9
  $region8: #{critic_forward.1} parent=0 // pred_region
    _
  $region9: #{critic_forward.1} parent=0 // pred_fallthru
    _
  // Predicated region
  $region10: #{critic_forward.1} parent=0 // pred_check
    _
  $region11: #{critic_forward.1} parent=0 // pred_check_branch
    %19 = sbr.rel (0) target = $region13
  $region12: #{critic_forward.1} parent=0 // pred_region
    _
  $region13: #{critic_forward.1} parent=0 // pred_fallthru
    _
  // Predicated region
  $region14: #{critic_forward.1} parent=0 // pred_check
    _
  $region15: #{critic_forward.1} parent=0 // pred_check_branch
    %21 = sbr.rel (0) target = $region17
  $region16: #{critic_forward.1} parent=0 // pred_region
    _
  $region17: #{critic_forward.1} parent=0 // pred_fallthru
    _
  // Predicated region
  $region18: #{critic_forward.1} parent=0 // pred_check
    _
  $region19: #{critic_forward.1} parent=0 // pred_check_branch
    %23 = sbr.rel (0) target = $region21
  $region20: #{critic_forward.1} parent=0 // pred_region
    _
  $region21: #{critic_forward.1} parent=0 // pred_fallthru
    _
  // Predicated region
  $region22: #{critic_forward.1} parent=0 // pred_check
    _
  $region23: #{critic_forward.1} parent=0 // pred_check_branch
    %25 = sbr.rel (0) target = $region25
  $region24: #{critic_forward.1} parent=0 // pred_region
    _
  $region25: #{critic_forward.1} parent=0 // pred_fallthru
    _
  // Predicated region
  $region26: #{critic_forward.1} parent=0 // pred_check
    _
  $region27: #{critic_forward.1} parent=0 // pred_check_branch
    %27 = sbr.rel (0) target = $region29
  $region28: #{critic_forward.1} parent=0 // pred_region
    _
  $region29: #{critic_forward.1} parent=0 // pred_fallthru
    _
  // Predicated region
  $region30: #{critic_forward.1} parent=0 // pred_check
    _
  $region31: #{critic_forward.1} parent=0 // pred_check_branch
    %29 = sbr.rel (0) target = $region33
  $region32: #{critic_forward.1} parent=0 // pred_region
    _
  $region33: #{critic_forward.1} parent=0 // pred_fallthru
    _
  // Predicated region
  $region34: #{critic_forward.1} parent=0 // pred_check
    _
  $region35: #{critic_forward.1} parent=0 // pred_check_branch
    %31 = sbr.rel (0) target = $region37
  $region36: #{critic_forward.1} parent=0 // pred_region
    _
  $region37: #{critic_forward.1} parent=0 // pred_fallthru
    _
  %v32 = vld [vmem:[%s0] sm:$0x3]
  %v33 = vld [vmem:[%s2] sm:$0xff]
  %v34 = vld [vmem:[%s2 + $0x8] sm:$0xf]
  %v35 = vld [vmem:[%s1] sm:$0x3]
  %v36 = vld [vmem:[%s3] sm:$0xf]
  %vm37 = vcmask 31744
  %v39 = vsel %vm37, %v35, 0
  %vm41 = vcmask 1043456
  %v43 = vsel %vm41, %v36, 0
  %45 = vmatprep.subr.mxu0 0.0
  %46 = vmatpush1.msra.mxu0 %v43
  %47 = vmatprep.subr.mxu0 0.0
  %48 = vmatpush1.msra.mxu0 0.0
  %49 = vmatprep.subr.mxu0 0.0
  %50 = vmatpush1.msra.mxu0 0.0
  %51 = vmatprep.subr.mxu0 0.0
  %52 = vmatpush1.msra.mxu0 0.0
  %53 = vmatprep.subr.mxu0 0.0
  %54 = vmatpush1.msra.mxu0 0.0
  %55 = vmatprep.subr.mxu0 0.0
  %56 = vmatpush1.msra.mxu0 0.0
  %57 = vmatprep.subr.mxu0 0.0
  %58 = vmatpush1.msra.mxu0 0.0
  %59 = vmatprep.subr.mxu0 0.0
  %60 = vmatpush1.msra.mxu0 0.0
  %61 = vmatprep.subr.mxu0 0.0
  %62 = vmatpush1.msra.mxu0 0.0
  %63 = vmatprep.subr.mxu0 0.0
  %64 = vmatpush1.msra.mxu0 0.0
  %65 = vmatprep.subr.mxu0 0.0
  %66 = vmatpush1.msra.mxu0 0.0
  %67 = vmatprep.subr.mxu0 0.0
  %68 = vmatpush1.msra.mxu0 0.0
  %69 = vmatprep.subr.mxu0 0.0
  %70 = vmatpush1.msra.mxu0 0.0
  %71 = vmatprep.subr.mxu0 0.0
  %72 = vmatpush1.msra.mxu0 0.0
  %73 = vmatprep.subr.mxu0 0.0
  %74 = vmatpush1.msra.mxu0 0.0
  %75 = vmatprep.subr.mxu0 0.0
  %76 = vmatpush1.msra.mxu0 0.0
  %77 = vmatprep.subr.mxu0 0.0
  %78 = vmatpush1.msra.mxu0 0.0
  %79 = vmatprep.subr.mxu0 0.0
  %80 = vmatpush1.msra.mxu0 0.0
  %81 = vmatprep.subr.mxu0 0.0
  %82 = vmatpush1.msra.mxu0 0.0
  %83 = vmatprep.subr.mxu0 0.0
  %84 = vmatpush1.msra.mxu0 0.0
  %85 = vmatprep.subr.mxu0 0.0
  %86 = vmatpush1.msra.mxu0 0.0
  %87 = vmatprep.subr.mxu0 0.0
  %88 = vmatpush1.msra.mxu0 0.0
  %89 = vmatprep.subr.mxu0 0.0
  %90 = vmatpush1.msra.mxu0 0.0
  %91 = vmatprep.subr.mxu0 0.0
  %92 = vmatpush1.msra.mxu0 0.0
  %93 = vmatprep.subr.mxu0 0.0
  %94 = vmatpush1.msra.mxu0 0.0
  %95 = vmatprep.subr.mxu0 0.0
  %96 = vmatpush1.msra.mxu0 0.0
  %97 = vmatprep.subr.mxu0 0.0
  %98 = vmatpush1.msra.mxu0 0.0
  %99 = vmatprep.subr.mxu0 0.0
  %100 = vmatpush1.msra.mxu0 0.0
  %101 = vmatprep.subr.mxu0 0.0
  %102 = vmatpush1.msra.mxu0 0.0
  %103 = vmatprep.subr.mxu0 0.0
  %104 = vmatpush1.msra.mxu0 0.0
  %105 = vmatprep.subr.mxu0 0.0
  %106 = vmatpush1.msra.mxu0 0.0
  %107 = vmatprep.subr.mxu0 0.0
  %108 = vmatpush1.msra.mxu0 0.0
  %109 = vmatprep.mubr.f32.mxu0 0.0
  %110 = vmatmul.mubr.f32.gmra.mrb[0].mxu0 %v39
  %v111 = vpop.f32.mrb[0].mxu0
  %v112 = vadd.f32 0.0, %v111
  %v113 = vpop.f32.mrb[0].mxu0
  %114 = vdwg.mxu0
  %vm115 = vcmask 97280
  %v117 = vsel %vm115, %v32, 0
  %v120 = vsel %vm41, %v34, 0
  %122 = vmatprep.subr.mxu0 0.0
  %123 = vmatpush1.msra.mxu0 %v33
  %124 = vmatprep.subr.mxu0 0.0
  %125 = vmatpush1.msra.mxu0 %v120
  %126 = vmatprep.subr.mxu0 0.0
  %127 = vmatpush1.msra.mxu0 0.0
  %128 = vmatprep.subr.mxu0 0.0
  %129 = vmatpush1.msra.mxu0 0.0
  %130 = vmatprep.subr.mxu0 0.0
  %131 = vmatpush1.msra.mxu0 0.0
  %132 = vmatprep.subr.mxu0 0.0
  %133 = vmatpush1.msra.mxu0 0.0
  %134 = vmatprep.subr.mxu0 0.0
  %135 = vmatpush1.msra.mxu0 0.0
  %136 = vmatprep.subr.mxu0 0.0
  %137 = vmatpush1.msra.mxu0 0.0
  %138 = vmatprep.subr.mxu0 0.0
  %139 = vmatpush1.msra.mxu0 0.0
  %140 = vmatprep.subr.mxu0 0.0
  %141 = vmatpush1.msra.mxu0 0.0
  %142 = vmatprep.subr.mxu0 0.0
  %143 = vmatpush1.msra.mxu0 0.0
  %144 = vmatprep.subr.mxu0 0.0
  %145 = vmatpush1.msra.mxu0 0.0
  %146 = vmatprep.subr.mxu0 0.0
  %147 = vmatpush1.msra.mxu0 0.0
  %148 = vmatprep.subr.mxu0 0.0
  %149 = vmatpush1.msra.mxu0 0.0
  %150 = vmatprep.subr.mxu0 0.0
  %151 = vmatpush1.msra.mxu0 0.0
  %152 = vmatprep.subr.mxu0 0.0
  %153 = vmatpush1.msra.mxu0 0.0
  %154 = vmatprep.subr.mxu0 0.0
  %155 = vmatpush1.msra.mxu0 0.0
  %156 = vmatprep.subr.mxu0 0.0
  %157 = vmatpush1.msra.mxu0 0.0
  %158 = vmatprep.subr.mxu0 0.0
  %159 = vmatpush1.msra.mxu0 0.0
  %160 = vmatprep.subr.mxu0 0.0
  %161 = vmatpush1.msra.mxu0 0.0
  %162 = vmatprep.subr.mxu0 0.0
  %163 = vmatpush1.msra.mxu0 0.0
  %164 = vmatprep.subr.mxu0 0.0
  %165 = vmatpush1.msra.mxu0 0.0
  %166 = vmatprep.subr.mxu0 0.0
  %167 = vmatpush1.msra.mxu0 0.0
  %168 = vmatprep.subr.mxu0 0.0
  %169 = vmatpush1.msra.mxu0 0.0
  %170 = vmatprep.subr.mxu0 0.0
  %171 = vmatpush1.msra.mxu0 0.0
  %172 = vmatprep.subr.mxu0 0.0
  %173 = vmatpush1.msra.mxu0 0.0
  %174 = vmatprep.subr.mxu0 0.0
  %175 = vmatpush1.msra.mxu0 0.0
  %176 = vmatprep.subr.mxu0 0.0
  %177 = vmatpush1.msra.mxu0 0.0
  %178 = vmatprep.subr.mxu0 0.0
  %179 = vmatpush1.msra.mxu0 0.0
  %180 = vmatprep.subr.mxu0 0.0
  %181 = vmatpush1.msra.mxu0 0.0
  %182 = vmatprep.subr.mxu0 0.0
  %183 = vmatpush1.msra.mxu0 0.0
  %184 = vmatprep.subr.mxu0 0.0
  %185 = vmatpush1.msra.mxu0 0.0
  %186 = vmatprep.mubr.f32.mxu0 0.0
  %187 = vmatmul.mubr.f32.gmra.mrb[0].mxu0 %v117
  %v188 = vpop.f32.mrb[0].mxu0
  %v189 = vadd.f32 %v112, %v188
  %v190 = vpop.f32.mrb[0].mxu0
  %191 = vdwg.mxu0
  %v192 = vld [vmem:[%s4] sm:$0x1]
  %v194 = vlaneseq
  %v195 = vshrl.u32 %v194, 7
  %v196 = vsub.s32 0, %v195
  %v197 = vrot.slane %v192, %v196
  %v199 = vadd.f32 %v189, %v197
  %v200 = vmax.f32 %v199, 0.0
  %v201 = vld [vmem:[%s5] sm:$0xff]
  %v202 = vld [vmem:[%s5 + $0x8] sm:$0xff]
  %v203 = vld [vmem:[%s5 + $0x10] sm:$0xff]
  %v204 = vld [vmem:[%s5 + $0x18] sm:$0xff]
  %v205 = vld [vmem:[%s5 + $0x20] sm:$0xff]
  %v206 = vld [vmem:[%s5 + $0x28] sm:$0xff]
  %v207 = vld [vmem:[%s5 + $0x30] sm:$0xff]
  %v208 = vld [vmem:[%s5 + $0x38] sm:$0xff]
  %v209 = vld [vmem:[%s6] sm:$0x1]
  %v211 = vlaneseq
  %v212 = vshrl.u32 %v211, 7
  %v213 = vsub.s32 0, %v212
  %v214 = vrot.slane %v209, %v213
  %vm216 = vcmask 523264
  %v218 = vsel %vm216, %v200, 0
  %220 = vmatprep.subr.mxu0 0.0
  %221 = vmatpush1.msra.mxu0 %v201
  %222 = vmatprep.subr.mxu0 0.0
  %223 = vmatpush1.msra.mxu0 %v202
  %224 = vmatprep.subr.mxu0 0.0
  %225 = vmatpush1.msra.mxu0 %v203
  %226 = vmatprep.subr.mxu0 0.0
  %227 = vmatpush1.msra.mxu0 %v204
  %228 = vmatprep.subr.mxu0 0.0
  %229 = vmatpush1.msra.mxu0 %v205
  %230 = vmatprep.subr.mxu0 0.0
  %231 = vmatpush1.msra.mxu0 %v206
  %232 = vmatprep.subr.mxu0 0.0
  %233 = vmatpush1.msra.mxu0 %v207
  %234 = vmatprep.subr.mxu0 0.0
  %235 = vmatpush1.msra.mxu0 %v208
  %236 = vmatprep.subr.mxu0 0.0
  %237 = vmatpush1.msra.mxu0 0.0
  %238 = vmatprep.subr.mxu0 0.0
  %239 = vmatpush1.msra.mxu0 0.0
  %240 = vmatprep.subr.mxu0 0.0
  %241 = vmatpush1.msra.mxu0 0.0
  %242 = vmatprep.subr.mxu0 0.0
  %243 = vmatpush1.msra.mxu0 0.0
  %244 = vmatprep.subr.mxu0 0.0
  %245 = vmatpush1.msra.mxu0 0.0
  %246 = vmatprep.subr.mxu0 0.0
  %247 = vmatpush1.msra.mxu0 0.0
  %248 = vmatprep.subr.mxu0 0.0
  %249 = vmatpush1.msra.mxu0 0.0
  %250 = vmatprep.subr.mxu0 0.0
  %251 = vmatpush1.msra.mxu0 0.0
  %252 = vmatprep.subr.mxu0 0.0
  %253 = vmatpush1.msra.mxu0 0.0
  %254 = vmatprep.subr.mxu0 0.0
  %255 = vmatpush1.msra.mxu0 0.0
  %256 = vmatprep.subr.mxu0 0.0
  %257 = vmatpush1.msra.mxu0 0.0
  %258 = vmatprep.subr.mxu0 0.0
  %259 = vmatpush1.msra.mxu0 0.0
  %260 = vmatprep.subr.mxu0 0.0
  %261 = vmatpush1.msra.mxu0 0.0
  %262 = vmatprep.subr.mxu0 0.0
  %263 = vmatpush1.msra.mxu0 0.0
  %264 = vmatprep.subr.mxu0 0.0
  %265 = vmatpush1.msra.mxu0 0.0
  %266 = vmatprep.subr.mxu0 0.0
  %267 = vmatpush1.msra.mxu0 0.0
  %268 = vmatprep.subr.mxu0 0.0
  %269 = vmatpush1.msra.mxu0 0.0
  %270 = vmatprep.subr.mxu0 0.0
  %271 = vmatpush1.msra.mxu0 0.0
  %272 = vmatprep.subr.mxu0 0.0
  %273 = vmatpush1.msra.mxu0 0.0
  %274 = vmatprep.subr.mxu0 0.0
  %275 = vmatpush1.msra.mxu0 0.0
  %276 = vmatprep.subr.mxu0 0.0
  %277 = vmatpush1.msra.mxu0 0.0
  %278 = vmatprep.subr.mxu0 0.0
  %279 = vmatpush1.msra.mxu0 0.0
  %280 = vmatprep.subr.mxu0 0.0
  %281 = vmatpush1.msra.mxu0 0.0
  %282 = vmatprep.subr.mxu0 0.0
  %283 = vmatpush1.msra.mxu0 0.0
  %284 = vmatprep.mubr.f32.mxu0 0.0
  %285 = vmatmul.mubr.f32.gmra.mrb[0].mxu0 %v218
  %v286 = vpop.f32.mrb[0].mxu0
  %v287 = vadd.f32 %v214, %v286
  %v288 = vpop.f32.mrb[0].mxu0
  %289 = vdwg.mxu0
  %v290 = vmax.f32 %v287, 0.0
  %v291 = vld [vmem:[%s7] sm:$0xff]
  %v292 = vld [vmem:[%s7 + $0x8] sm:$0xff]
  %v293 = vld [vmem:[%s7 + $0x10] sm:$0xff]
  %v294 = vld [vmem:[%s7 + $0x18] sm:$0xff]
  %v295 = vld [vmem:[%s7 + $0x20] sm:$0xff]
  %v296 = vld [vmem:[%s7 + $0x28] sm:$0xff]
  %v297 = vld [vmem:[%s7 + $0x30] sm:$0xff]
  %v298 = vld [vmem:[%s7 + $0x38] sm:$0xff]
  %v299 = vld [vmem:[%s8] sm:$0x1]
  %v301 = vlaneseq
  %v302 = vshrl.u32 %v301, 7
  %v303 = vsub.s32 0, %v302
  %v304 = vrot.slane %v299, %v303
  %v307 = vsel %vm216, %v290, 0
  %309 = vmatprep.subr.mxu0 0.0
  %310 = vmatpush1.msra.mxu0 %v291
  %311 = vmatprep.subr.mxu0 0.0
  %312 = vmatpush1.msra.mxu0 %v292
  %313 = vmatprep.subr.mxu0 0.0
  %314 = vmatpush1.msra.mxu0 %v293
  %315 = vmatprep.subr.mxu0 0.0
  %316 = vmatpush1.msra.mxu0 %v294
  %317 = vmatprep.subr.mxu0 0.0
  %318 = vmatpush1.msra.mxu0 %v295
  %319 = vmatprep.subr.mxu0 0.0
  %320 = vmatpush1.msra.mxu0 %v296
  %321 = vmatprep.subr.mxu0 0.0
  %322 = vmatpush1.msra.mxu0 %v297
  %323 = vmatprep.subr.mxu0 0.0
  %324 = vmatpush1.msra.mxu0 %v298
  %325 = vmatprep.subr.mxu0 0.0
  %326 = vmatpush1.msra.mxu0 0.0
  %327 = vmatprep.subr.mxu0 0.0
  %328 = vmatpush1.msra.mxu0 0.0
  %329 = vmatprep.subr.mxu0 0.0
  %330 = vmatpush1.msra.mxu0 0.0
  %331 = vmatprep.subr.mxu0 0.0
  %332 = vmatpush1.msra.mxu0 0.0
  %333 = vmatprep.subr.mxu0 0.0
  %334 = vmatpush1.msra.mxu0 0.0
  %335 = vmatprep.subr.mxu0 0.0
  %336 = vmatpush1.msra.mxu0 0.0
  %337 = vmatprep.subr.mxu0 0.0
  %338 = vmatpush1.msra.mxu0 0.0
  %339 = vmatprep.subr.mxu0 0.0
  %340 = vmatpush1.msra.mxu0 0.0
  %341 = vmatprep.subr.mxu0 0.0
  %342 = vmatpush1.msra.mxu0 0.0
  %343 = vmatprep.subr.mxu0 0.0
  %344 = vmatpush1.msra.mxu0 0.0
  %345 = vmatprep.subr.mxu0 0.0
  %346 = vmatpush1.msra.mxu0 0.0
  %347 = vmatprep.subr.mxu0 0.0
  %348 = vmatpush1.msra.mxu0 0.0
  %349 = vmatprep.subr.mxu0 0.0
  %350 = vmatpush1.msra.mxu0 0.0
  %351 = vmatprep.subr.mxu0 0.0
  %352 = vmatpush1.msra.mxu0 0.0
  %353 = vmatprep.subr.mxu0 0.0
  %354 = vmatpush1.msra.mxu0 0.0
  %355 = vmatprep.subr.mxu0 0.0
  %356 = vmatpush1.msra.mxu0 0.0
  %357 = vmatprep.subr.mxu0 0.0
  %358 = vmatpush1.msra.mxu0 0.0
  %359 = vmatprep.subr.mxu0 0.0
  %360 = vmatpush1.msra.mxu0 0.0
  %361 = vmatprep.subr.mxu0 0.0
  %362 = vmatpush1.msra.mxu0 0.0
  %363 = vmatprep.subr.mxu0 0.0
  %364 = vmatpush1.msra.mxu0 0.0
  %365 = vmatprep.subr.mxu0 0.0
  %366 = vmatpush1.msra.mxu0 0.0
  %367 = vmatprep.subr.mxu0 0.0
  %368 = vmatpush1.msra.mxu0 0.0
  %369 = vmatprep.subr.mxu0 0.0
  %370 = vmatpush1.msra.mxu0 0.0
  %371 = vmatprep.subr.mxu0 0.0
  %372 = vmatpush1.msra.mxu0 0.0
  %373 = vmatprep.mubr.f32.mxu0 0.0
  %374 = vmatmul.mubr.f32.gmra.mrb[0].mxu0 %v307
  %v375 = vpop.f32.mrb[0].mxu0
  %v376 = vadd.f32 %v304, %v375
  %v377 = vpop.f32.mrb[0].mxu0
  %378 = vdwg.mxu0
  %vm379 = vcmask 9216
  %380 = vst.msk [vmem:[%s9] sm:$0x3] %vm379, %v376
  // Predicated region
  $region38: #{critic_forward.1} parent=0 // pred_check
    _
  $region39: #{critic_forward.1} parent=0 // pred_check_branch
    %382 = sbr.rel (0) target = $region41
  $region40: #{critic_forward.1} parent=0 // pred_region
    _
  $region41: #{critic_forward.1} parent=0 // pred_fallthru
    _
  // Predicated region
  $region42: #{critic_forward.1} parent=0 // pred_check
    _
  $region43: #{critic_forward.1} parent=0 // pred_check_branch
    %384 = sbr.rel (0) target = $region45
  $region44: #{critic_forward.1} parent=0 // pred_region
    _
  $region45: #{critic_forward.1} parent=0 // pred_fallthru
    _

</llo_original>
